<compile_context>
chip_gen: v6e
topology: v6e:2x2x1
jax: 0.10.0
libtpu: 0.0.40
codegen_flags: <defaults>
</compile_context>

<pallas_src>
import math
import numpy as np
import jax
import jax.numpy as jnp
from jax import lax
from jax.experimental import pallas as pl
from jax.experimental.pallas import tpu as pltpu


def _make_kernel(TB, L_out, KC, C_pad, eps):
    M = TB * L_out

    def kernel(x_ref, w_ref, b_ref, P_ref, gamma_ref, beta_ref, o_ref):
        # x_ref:     (TB, L_out, K*C_in)  im2col'd rows for TB batch elements
        # w_ref:     (K*C_in, C_pad)      packed conv weight (lane-padded)
        # b_ref / gamma_ref / beta_ref: (1, C_pad)
        # P_ref:     (C_pad, C_pad)       (chan -> group -> chan) / count
        # o_ref:     (TB, L_out, C_pad)

        # ---- Conv1d: one MXU matmul over the K*C_in contraction ----
        # (L_out is a multiple of 8 here, so this reshape is a free view.)
        xm = x_ref[...].reshape(M, KC)
        acc = jnp.dot(xm, w_ref[...], preferred_element_type=jnp.float32)
        acc = acc.reshape(TB, L_out, C_pad) + b_ref[...]      # (TB, L_out, C_pad)

        # ---- GroupNorm: per-(batch, group) stats via one projection each ----
        s1 = jnp.sum(acc, axis=1)                             # (TB, C_pad)  XLU
        mean_c = jnp.dot(s1, P_ref[...],
                         preferred_element_type=jnp.float32)  # (TB, C_pad)
        d = acc - mean_c[:, None, :]
        s2 = jnp.sum(d * d, axis=1)                           # (TB, C_pad)
        var_c = jnp.dot(s2, P_ref[...],
                        preferred_element_type=jnp.float32)   # (TB, C_pad)
        scale = lax.rsqrt(var_c + eps) * gamma_ref[...]       # EUP rsqrt
        y = d * scale[:, None, :] + beta_ref[...]

        # ---- Mish: y * tanh(softplus(y)), single-exp rational form ----
        # tanh(log(1+e^y)) = ((1+e^y)^2 - 1) / ((1+e^y)^2 + 1), stabilized
        # with t = exp(-|y|).
        t = jnp.exp(-jnp.abs(y))
        a = (1.0 + t) * (1.0 + t)
        w = jnp.where(y >= 0.0, t * t, 1.0)
        num = a - w
        den = a + w                                           # in [1, 5] -> safe
        r = pl.reciprocal(den, approx=True)
        r = r * (2.0 - den * r)                               # Newton refine
        o_ref[...] = (y * num * r).astype(o_ref.dtype)

    return kernel


def conv1d_block(x, conv_w, conv_b, gamma, beta, *, n_groups=8, eps=1e-5,
                 use_bf16_matmul=False):
    """Conv1d(pad=K//2) -> GroupNorm(n_groups) -> Mish.

    x: (B, C_in, L); conv_w: (C_out, C_in, K); conv_b/gamma/beta: (C_out,).
    Returns (B, C_out, L_out), L_out = L + 2*(K//2) - K + 1 (== L for odd K).
    """
    B, C_in, L = x.shape
    C_out, _, K = conv_w.shape
    assert C_out % n_groups == 0
    cpg = C_out // n_groups
    pad = K // 2
    L_out = L + 2 * pad - K + 1
    KC = K * C_in

    # ---------- wrapper-side layout plumbing (no in-kernel transposes) ----------
    # im2col: (B, L_out, K*C_in) with C_in fastest within each tap.
    x_t = jnp.pad(jnp.transpose(x, (0, 2, 1)), ((0, 0), (pad, pad), (0, 0)))
    cols = jnp.stack([x_t[:, k:k + L_out, :] for k in range(K)], axis=2)
    x_cols = cols.reshape(B, L_out, KC)

    # conv weight packed as (K*C_in, C_out): w2[k*C_in+ci, co] = conv_w[co,ci,k]
    w2 = jnp.transpose(conv_w, (2, 1, 0)).reshape(KC, C_out)

    # lane-dense channel padding (unmasked stores, full vreg utilization)
    C_pad = max(128, pl.cdiv(C_out, 128) * 128)
    pc = C_pad - C_out
    w2 = jnp.pad(w2, ((0, 0), (0, pc)))
    b2 = jnp.pad(conv_b, (0, pc)).reshape(1, C_pad)
    g2 = jnp.pad(gamma, (0, pc)).reshape(1, C_pad)
    be2 = jnp.pad(beta, (0, pc)).reshape(1, C_pad)

    # P[c, c'] = [group(c) == group(c')] / (cpg * L_out); zero for padded chans,
    # so padded channels never pollute the statistics and stay exactly zero.
    ch_grp = np.arange(C_out) // cpg
    P_np = np.zeros((C_pad, C_pad), np.float32)
    P_np[:C_out, :C_out] = (ch_grp[:, None] == ch_grp[None, :]).astype(np.float32)
    P_np /= float(cpg * L_out)
    P = jnp.asarray(P_np)

    # batch blocking: fill the MXU M dimension (~256 rows per grid step)
    TB = max(1, min(B, pl.cdiv(256, L_out)))
    Bp = pl.cdiv(B, TB) * TB
    if Bp != B:
        x_cols = jnp.pad(x_cols, ((0, Bp - B), (0, 0), (0, 0)))

    if use_bf16_matmul:  # v6e / v7x MXU fast path; accumulation stays f32
        x_cols = x_cols.astype(jnp.bfloat16)
        w2 = w2.astype(jnp.bfloat16)

    kernel = _make_kernel(TB, L_out, KC, C_pad, eps)

    def const2d(shape):
        return pl.BlockSpec(shape, lambda i: (0, 0))

    out = pl.pallas_call(
        kernel,
        out_shape=jax.ShapeDtypeStruct((Bp, L_out, C_pad), x.dtype),
        grid_spec=pltpu.PrefetchScalarGridSpec(
            num_scalar_prefetch=0,
            grid=(Bp // TB,),
            in_specs=[
                pl.BlockSpec((TB, L_out, KC), lambda i: (i, 0, 0)),
                const2d((KC, C_pad)),
                const2d((1, C_pad)),
                const2d((C_pad, C_pad)),
                const2d((1, C_pad)),
                const2d((1, C_pad)),
            ],
            out_specs=pl.BlockSpec((TB, L_out, C_pad), lambda i: (i, 0, 0)),
        ),
        compiler_params=pltpu.CompilerParams(
            dimension_semantics=("parallel",)),
    )(x_cols, w2, b2, P, g2, be2)

    # TODO(synk): skip this transpose if the consumer accepts (B, L_out, C_out)
    # channels-last layout (saves one full-output HBM round trip).
    return jnp.transpose(out[:B, :, :C_out], (0, 2, 1))


def reference_conv1d_block(x, conv_w, conv_b, gamma, beta, n_groups, eps=1e-5):
    """Pure-JAX reference mirroring the PyTorch forward."""
    K = conv_w.shape[-1]
    pad = K // 2
    y = lax.conv_general_dilated(
        x, conv_w, window_strides=(1,), padding=[(pad, pad)],
        dimension_numbers=('NCH', 'OIH', 'NCH'))
    y = y + conv_b[None, :, None]
    B, C, Lo = y.shape
    yg = y.reshape(B, n_groups, C // n_groups, Lo)
    mean = yg.mean(axis=(2, 3), keepdims=True)
    var = ((yg - mean) ** 2).mean(axis=(2, 3), keepdims=True)
    yn = ((yg - mean) / jnp.sqrt(var + eps)).reshape(B, C, Lo)
    yn = yn * gamma[None, :, None] + beta[None, :, None]
    sp = jnp.maximum(yn, 0.0) + jnp.log1p(jnp.exp(-jnp.abs(yn)))
    return yn * jnp.tanh(sp)


if __name__ == "__main__":
    B, C_in, C_out, L, K, G = 2, 4, 16, 16, 5, 8

    key = jax.random.PRNGKey(0)
    k0, k1, k2, k3, k4 = jax.random.split(key, 5)
    x = jax.random.normal(k0, (B, C_in, L), jnp.float32)
    bound = 1.0 / math.sqrt(C_in * K)
    conv_w = jax.random.uniform(k1, (C_out, C_in, K), jnp.float32, -bound, bound)
    conv_b = jax.random.uniform(k2, (C_out,), jnp.float32, -bound, bound)
    gamma = 1.0 + 0.1 * jax.random.normal(k3, (C_out,), jnp.float32)
    beta = 0.1 * jax.random.normal(k4, (C_out,), jnp.float32)

    out = jax.block_until_ready(
        conv1d_block(x, conv_w, conv_b, gamma, beta, n_groups=G))
    ref = jax.block_until_ready(
        reference_conv1d_block(x, conv_w, conv_b, gamma, beta, G))

    assert out.shape == ref.shape == (B, C_out, L)
    np.testing.assert_allclose(np.asarray(out), np.asarray(ref),
                               rtol=1e-4, atol=1e-4)
    print("KERNEL_OK")
</pallas_src>

<mosaic_0001>
module attributes {stable_mosaic.version = 11 : i64} {
  func.func @kernel(%arg0: i32, %arg1: memref<2x16x20xf32, #tpu.memory_space<vmem>>, %arg2: memref<20x128xf32, #tpu.memory_space<vmem>>, %arg3: memref<1x128xf32, #tpu.memory_space<vmem>>, %arg4: memref<128x128xf32, #tpu.memory_space<vmem>>, %arg5: memref<1x128xf32, #tpu.memory_space<vmem>>, %arg6: memref<1x128xf32, #tpu.memory_space<vmem>>, %arg7: memref<2x16x128xf32, #tpu.memory_space<vmem>>) attributes {dimension_semantics = [#tpu.dimension_semantics<parallel>], iteration_bounds = array<i64: 1>, scalar_prefetch = 0 : i64, scratch_operands = 0 : i64, tpu.core_type = #tpu.core_type<tc>, window_params = [{transform_indices = @transform_0, window_bounds = array<i64: 2, 16, 20>}, {pipeline_mode = #tpu.pipeline_mode<synchronous>, transform_indices = @transform_1, window_bounds = array<i64: 20, 128>}, {pipeline_mode = #tpu.pipeline_mode<synchronous>, transform_indices = @transform_2, window_bounds = array<i64: 1, 128>}, {pipeline_mode = #tpu.pipeline_mode<synchronous>, transform_indices = @transform_3, window_bounds = array<i64: 128, 128>}, {pipeline_mode = #tpu.pipeline_mode<synchronous>, transform_indices = @transform_4, window_bounds = array<i64: 1, 128>}, {pipeline_mode = #tpu.pipeline_mode<synchronous>, transform_indices = @transform_5, window_bounds = array<i64: 1, 128>}, {transform_indices = @transform_6, window_bounds = array<i64: 2, 16, 128>}]} {
    %c0 = arith.constant 0 : index
    %c0_0 = arith.constant 0 : index
    %c0_1 = arith.constant 0 : index
    %0 = vector.load %arg1[%c0, %c0_0, %c0_1] : memref<2x16x20xf32, #tpu.memory_space<vmem>>, vector<2x16x20xf32>
    %1 = vector.shape_cast %0 : vector<2x16x20xf32> to vector<32x20xf32>
    %c0_2 = arith.constant 0 : index
    %c0_3 = arith.constant 0 : index
    %2 = vector.load %arg2[%c0_2, %c0_3] : memref<20x128xf32, #tpu.memory_space<vmem>>, vector<20x128xf32>
    %cst = arith.constant dense<0.000000e+00> : vector<32x128xf32>
    %3 = tpu.matmul %1, %2, %cst {dimension_numbers = #tpu.dot_dimension_numbers<[1], [0], [0], [1], [0, 0, 1, 1], [], []>} : vector<32x20xf32>, vector<20x128xf32>, vector<32x128xf32> -> vector<32x128xf32>
    %4 = vector.shape_cast %3 : vector<32x128xf32> to vector<2x16x128xf32>
    %c0_4 = arith.constant 0 : index
    %c0_5 = arith.constant 0 : index
    %5 = vector.load %arg3[%c0_4, %c0_5] : memref<1x128xf32, #tpu.memory_space<vmem>>, vector<1x128xf32>
    %6 = vector.shape_cast %5 : vector<1x128xf32> to vector<1x1x128xf32>
    %7 = vector.broadcast %6 : vector<1x1x128xf32> to vector<2x16x128xf32>
    %8 = arith.addf %4, %7 : vector<2x16x128xf32>
    %cst_6 = arith.constant dense<0.000000e+00> : vector<2x128xf32>
    %9 = vector.multi_reduction <add>, %8, %cst_6 [1] : vector<2x16x128xf32> to vector<2x128xf32>
    %c0_7 = arith.constant 0 : index
    %c0_8 = arith.constant 0 : index
    %10 = vector.load %arg4[%c0_7, %c0_8] : memref<128x128xf32, #tpu.memory_space<vmem>>, vector<128x128xf32>
    %cst_9 = arith.constant dense<0.000000e+00> : vector<2x128xf32>
    %11 = tpu.matmul %9, %10, %cst_9 {dimension_numbers = #tpu.dot_dimension_numbers<[1], [0], [0], [1], [0, 0, 1, 1], [], []>} : vector<2x128xf32>, vector<128x128xf32>, vector<2x128xf32> -> vector<2x128xf32>
    %12 = vector.shape_cast %11 : vector<2x128xf32> to vector<2x1x128xf32>
    %13 = vector.broadcast %12 : vector<2x1x128xf32> to vector<2x16x128xf32>
    %14 = arith.subf %8, %13 : vector<2x16x128xf32>
    %15 = arith.mulf %14, %14 : vector<2x16x128xf32>
    %cst_10 = arith.constant dense<0.000000e+00> : vector<2x128xf32>
    %16 = vector.multi_reduction <add>, %15, %cst_10 [1] : vector<2x16x128xf32> to vector<2x128xf32>
    %c0_11 = arith.constant 0 : index
    %c0_12 = arith.constant 0 : index
    %17 = vector.load %arg4[%c0_11, %c0_12] : memref<128x128xf32, #tpu.memory_space<vmem>>, vector<128x128xf32>
    %cst_13 = arith.constant dense<0.000000e+00> : vector<2x128xf32>
    %18 = tpu.matmul %16, %17, %cst_13 {dimension_numbers = #tpu.dot_dimension_numbers<[1], [0], [0], [1], [0, 0, 1, 1], [], []>} : vector<2x128xf32>, vector<128x128xf32>, vector<2x128xf32> -> vector<2x128xf32>
    %cst_14 = arith.constant 9.99999974E-6 : f32
    %19 = vector.broadcast %cst_14 : f32 to vector<2x128xf32>
    %20 = arith.addf %18, %19 : vector<2x128xf32>
    %21 = math.rsqrt %20 : vector<2x128xf32>
    %c0_15 = arith.constant 0 : index
    %c0_16 = arith.constant 0 : index
    %22 = vector.load %arg5[%c0_15, %c0_16] : memref<1x128xf32, #tpu.memory_space<vmem>>, vector<1x128xf32>
    %23 = vector.broadcast %22 : vector<1x128xf32> to vector<2x128xf32>
    %24 = arith.mulf %21, %23 : vector<2x128xf32>
    %25 = vector.shape_cast %24 : vector<2x128xf32> to vector<2x1x128xf32>
    %26 = vector.broadcast %25 : vector<2x1x128xf32> to vector<2x16x128xf32>
    %27 = arith.mulf %14, %26 : vector<2x16x128xf32>
    %c0_17 = arith.constant 0 : index
    %c0_18 = arith.constant 0 : index
    %28 = vector.load %arg6[%c0_17, %c0_18] : memref<1x128xf32, #tpu.memory_space<vmem>>, vector<1x128xf32>
    %29 = vector.shape_cast %28 : vector<1x128xf32> to vector<1x1x128xf32>
    %30 = vector.broadcast %29 : vector<1x1x128xf32> to vector<2x16x128xf32>
    %31 = arith.addf %27, %30 : vector<2x16x128xf32>
    %32 = math.absf %31 : vector<2x16x128xf32>
    %cst_19 = arith.constant 0.000000e+00 : f32
    %33 = vector.broadcast %cst_19 : f32 to vector<2x16x128xf32>
    %34 = arith.subf %33, %32 : vector<2x16x128xf32>
    %35 = math.exp %34 : vector<2x16x128xf32>
    %cst_20 = arith.constant 1.000000e+00 : f32
    %36 = vector.broadcast %cst_20 : f32 to vector<2x16x128xf32>
    %37 = arith.addf %36, %35 : vector<2x16x128xf32>
    %cst_21 = arith.constant 1.000000e+00 : f32
    %38 = vector.broadcast %cst_21 : f32 to vector<2x16x128xf32>
    %39 = arith.addf %38, %35 : vector<2x16x128xf32>
    %40 = arith.mulf %37, %39 : vector<2x16x128xf32>
    %cst_22 = arith.constant 0.000000e+00 : f32
    %41 = vector.broadcast %cst_22 : f32 to vector<2x16x128xf32>
    %42 = arith.cmpf oge, %31, %41 : vector<2x16x128xf32>
    %43 = arith.mulf %35, %35 : vector<2x16x128xf32>
    %cst_23 = arith.constant 1.000000e+00 : f32
    %44 = vector.broadcast %cst_23 : f32 to vector<2x16x128xf32>
    %45 = arith.select %42, %43, %44 : vector<2x16x128xi1>, vector<2x16x128xf32>
    %46 = arith.subf %40, %45 : vector<2x16x128xf32>
    %47 = arith.addf %40, %45 : vector<2x16x128xf32>
    %48 = tpu.reciprocal %47 {approx = true} : vector<2x16x128xf32> -> vector<2x16x128xf32>
    %49 = arith.mulf %47, %48 : vector<2x16x128xf32>
    %cst_24 = arith.constant 2.000000e+00 : f32
    %50 = vector.broadcast %cst_24 : f32 to vector<2x16x128xf32>
    %51 = arith.subf %50, %49 : vector<2x16x128xf32>
    %52 = arith.mulf %48, %51 : vector<2x16x128xf32>
    %53 = arith.mulf %31, %46 : vector<2x16x128xf32>
    %54 = arith.mulf %53, %52 : vector<2x16x128xf32>
    %c0_25 = arith.constant 0 : index
    %c0_26 = arith.constant 0 : index
    %c0_27 = arith.constant 0 : index
    %55 = vector.load %arg7[%c0_25, %c0_26, %c0_27] : memref<2x16x128xf32, #tpu.memory_space<vmem>>, vector<2x16x128xf32>
    tpu.vector_store %arg7[%c0_25, %c0_26, %c0_27], %54 {strides = array<i32>} : memref<2x16x128xf32, #tpu.memory_space<vmem>>, vector<2x16x128xf32>,
    return
  }
  func.func @transform_0(%arg0: i32) -> (i32, i32, i32) {
    %c0_i32 = arith.constant 0 : i32
    %c0_i32_0 = arith.constant 0 : i32
    %c0_i32_1 = arith.constant 0 : i32
    return %arg0, %c0_i32, %c0_i32_0 : i32, i32, i32
  }
  func.func @transform_1(%arg0: i32) -> (i32, i32) {
    %c0_i32 = arith.constant 0 : i32
    %c0_i32_0 = arith.constant 0 : i32
    %c0_i32_1 = arith.constant 0 : i32
    return %c0_i32, %c0_i32_0 : i32, i32
  }
  func.func @transform_2(%arg0: i32) -> (i32, i32) {
    %c0_i32 = arith.constant 0 : i32
    %c0_i32_0 = arith.constant 0 : i32
    %c0_i32_1 = arith.constant 0 : i32
    return %c0_i32, %c0_i32_0 : i32, i32
  }
  func.func @transform_3(%arg0: i32) -> (i32, i32) {
    %c0_i32 = arith.constant 0 : i32
    %c0_i32_0 = arith.constant 0 : i32
    %c0_i32_1 = arith.constant 0 : i32
    return %c0_i32, %c0_i32_0 : i32, i32
  }
  func.func @transform_4(%arg0: i32) -> (i32, i32) {
    %c0_i32 = arith.constant 0 : i32
    %c0_i32_0 = arith.constant 0 : i32
    %c0_i32_1 = arith.constant 0 : i32
    return %c0_i32, %c0_i32_0 : i32, i32
  }
  func.func @transform_5(%arg0: i32) -> (i32, i32) {
    %c0_i32 = arith.constant 0 : i32
    %c0_i32_0 = arith.constant 0 : i32
    %c0_i32_1 = arith.constant 0 : i32
    return %c0_i32, %c0_i32_0 : i32, i32
  }
  func.func @transform_6(%arg0: i32) -> (i32, i32, i32) {
    %c0_i32 = arith.constant 0 : i32
    %c0_i32_0 = arith.constant 0 : i32
    %c0_i32_1 = arith.constant 0 : i32
    return %arg0, %c0_i32, %c0_i32_0 : i32, i32, i32
  }
}

</mosaic_0001>

<llo_original>
// kernel: tpu_custom_call.1
$region0: #{tpu_custom_call.1}
  #allocation0 [shape = 'u32[]', space=smem, size = 0x4, offset = 0x4, fixed_abs, tag = 'smem constant byte address 0x4 - core index']
  #allocation1 [shape = 'u32[144,128]{1,0:T(1,128)}', space=vmem, size = 0x12000, scoped, tag = 'internal scratch']
  %s0 = inlined_call_operand.hbm [shape: f32[2,16,20], index: 0, kind: input, shape index: {}]
  %s1 = inlined_call_operand.hbm [shape: f32[20,128], index: 1, kind: input, shape index: {}]
  %s2 = inlined_call_operand.vmem [shape: f32[1,128], index: 2, kind: input, shape index: {}]
  %s3 = inlined_call_operand.hbm [shape: f32[128,128], index: 3, kind: input, shape index: {}]
  %s4 = inlined_call_operand.vmem [shape: f32[1,128], index: 4, kind: input, shape index: {}]
  %s5 = inlined_call_operand.vmem [shape: f32[1,128], index: 5, kind: input, shape index: {}]
  %s6 = inlined_call_operand.hbm [shape: f32[2,16,128], index: 6, kind: output, shape index: {}]
  %s7 = sld [smem:[#allocation0]]
  $region46: #{tpu_custom_call.1} parent=0
    _
  %s9 = ssub.s32 1, %s7
  %s10 = scalar_select 0, %s9, %s7
  $region1: #{tpu_custom_call.1} parent=0
    #allocation2 [shape = 'u8[16384]{0}', space=vmem, size = 0x4000, scoped, tag = 'input window, operand 0, single buffered']
    #allocation3 [shape = 's32[1]{0}', space=sflag, size = 0x4, scoped, tag = 'scoped memory for tpu_custom_call.1']
    #allocation4 [shape = 's32[1]{0}', space=sflag, size = 0x4, scoped, tag = 'scoped memory for tpu_custom_call.1']
    #allocation5 [shape = 'u8[12288]{0}', space=vmem, size = 0x3000, scoped, tag = 'input window, operand 1, single buffered']
    #allocation6 [shape = 's32[1]{0}', space=sflag, size = 0x4, scoped, tag = 'scoped memory for tpu_custom_call.1']
    #allocation7 [shape = 'u8[65536]{0}', space=vmem, size = 0x10000, scoped, tag = 'input window, operand 3, single buffered']
    #allocation8 [shape = 'u8[16384]{0}', space=vmem, size = 0x4000, scoped, tag = 'output window, operand 0, single buffered']
    %11 = vsyncpa [#allocation3], 0
    %12 = vsyncpa [#allocation6], 0
    %13 = vsyncpa [#allocation4], 0
    // Predicated region
    $region2: #{tpu_custom_call.1} parent=1 // pred_check
      _
    $region3: #{tpu_custom_call.1} parent=1 // pred_check_branch
      %15 = sbr.rel (0) target = $region5
    $region4: #{tpu_custom_call.1} parent=1 // pred_region
      %s17 = ssub.s32 512, 512
      %18 = vsyncadd [#allocation3], %s17
      %s19 = sshll.u32 [#allocation2], 4
      %s20 = int_to_ptr.vmem [resolvable:$true] %s19
      %25 = dma.hbm_to_vmem [thread:$0]  %s0, 512, %s20, [#allocation3], 128, 128, 8
    $region5: #{tpu_custom_call.1} parent=1 // pred_fallthru
      _
    // Predicated region
    $region6: #{tpu_custom_call.1} parent=1 // pred_check
      _
    $region7: #{tpu_custom_call.1} parent=1 // pred_check_branch
      %27 = sbr.rel (0) target = $region9
    $region8: #{tpu_custom_call.1} parent=1 // pred_region
      %s29 = ssub.s32 384, 384
      %30 = vsyncadd [#allocation6], %s29
      %s31 = sshll.u32 [#allocation5], 4
      %s32 = int_to_ptr.vmem [resolvable:$true] %s31
      %37 = dma.hbm_to_vmem [thread:$0]  %s1, 384, %s32, [#allocation6], 128, 128, 8
    $region9: #{tpu_custom_call.1} parent=1 // pred_fallthru
      _
    // Predicated region
    $region10: #{tpu_custom_call.1} parent=1 // pred_check
      _
    $region11: #{tpu_custom_call.1} parent=1 // pred_check_branch
      %39 = sbr.rel (0) target = $region13
    $region12: #{tpu_custom_call.1} parent=1 // pred_region
      _
    $region13: #{tpu_custom_call.1} parent=1 // pred_fallthru
      _
    // Predicated region
    $region14: #{tpu_custom_call.1} parent=1 // pred_check
      _
    $region15: #{tpu_custom_call.1} parent=1 // pred_check_branch
      %41 = sbr.rel (0) target = $region17
    $region16: #{tpu_custom_call.1} parent=1 // pred_region
      %s43 = ssub.s32 2048, 2048
      %44 = vsyncadd [#allocation6], %s43
      %s45 = sshll.u32 [#allocation7], 4
      %s46 = int_to_ptr.vmem [resolvable:$true] %s45
      %51 = dma.hbm_to_vmem [thread:$0]  %s3, 2048, %s46, [#allocation6], 128, 128, 8
    $region17: #{tpu_custom_call.1} parent=1 // pred_fallthru
      _
    // Predicated region
    $region18: #{tpu_custom_call.1} parent=1 // pred_check
      _
    $region19: #{tpu_custom_call.1} parent=1 // pred_check_branch
      %53 = sbr.rel (0) target = $region21
    $region20: #{tpu_custom_call.1} parent=1 // pred_region
      _
    $region21: #{tpu_custom_call.1} parent=1 // pred_fallthru
      _
    // Predicated region
    $region22: #{tpu_custom_call.1} parent=1 // pred_check
      _
    $region23: #{tpu_custom_call.1} parent=1 // pred_check_branch
      %55 = sbr.rel (0) target = $region25
    $region24: #{tpu_custom_call.1} parent=1 // pred_region
      _
    $region25: #{tpu_custom_call.1} parent=1 // pred_fallthru
      _
    // Predicated region
    $region26: #{tpu_custom_call.1} parent=1 // pred_check
      _
    $region27: #{tpu_custom_call.1} parent=1 // pred_check_branch
      %57 = sbr.rel (0) target = $region29
    $region28: #{tpu_custom_call.1} parent=1 // pred_region
      %58 = dma.done [#allocation3], 512
    $region29: #{tpu_custom_call.1} parent=1 // pred_fallthru
      _
    // Predicated region
    $region30: #{tpu_custom_call.1} parent=1 // pred_check
      _
    $region31: #{tpu_custom_call.1} parent=1 // pred_check_branch
      %60 = sbr.rel (0) target = $region33
    $region32: #{tpu_custom_call.1} parent=1 // pred_region
      %61 = dma.done [#allocation6], 384
    $region33: #{tpu_custom_call.1} parent=1 // pred_fallthru
      _
    // Predicated region
    $region34: #{tpu_custom_call.1} parent=1 // pred_check
      _
    $region35: #{tpu_custom_call.1} parent=1 // pred_check_branch
      %63 = sbr.rel (0) target = $region37
    $region36: #{tpu_custom_call.1} parent=1 // pred_region
      %64 = dma.done [#allocation6], 2048
    $region37: #{tpu_custom_call.1} parent=1 // pred_fallthru
      _
    %v65 = vld [vmem:[#allocation2] sm:$0xff]
    %v66 = vld [vmem:[#allocation2 + $0x8] sm:$0xff]
    %v67 = vld [vmem:[#allocation2 + $0x10] sm:$0xff]
    %v68 = vld [vmem:[#allocation2 + $0x18] sm:$0xff]
    %v69 = vld [vmem:[#allocation5] sm:$0xff]
    %v70 = vld [vmem:[#allocation5 + $0x8] sm:$0xff]
    %v71 = vld [vmem:[#allocation5 + $0x10] sm:$0xf]
    %vm72 = vcmask 162816
    %v74 = vsel %vm72, %v65, 0
    %v77 = vsel %vm72, %v66, 0
    %v80 = vsel %vm72, %v67, 0
    %v83 = vsel %vm72, %v68, 0
    %vm85 = vcmask 1043456
    %v87 = vsel %vm85, %v71, 0
    %89 = vmatprep.subr.mxu0 0.0
    %90 = vmatpush1.msra.mxu0 0.0
    %91 = vmatprep.subr.mxu0 0.0
    %92 = vmatpush1.msra.mxu0 0.0
    %93 = vmatprep.subr.mxu0 0.0
    %94 = vmatpush1.msra.mxu0 0.0
    %95 = vmatprep.subr.mxu0 0.0
    %96 = vmatpush1.msra.mxu0 0.0
    %97 = vmatprep.subr.mxu0 0.0
    %98 = vmatpush1.msra.mxu0 0.0
    %99 = vmatprep.subr.mxu0 0.0
    %100 = vmatpush1.msra.mxu0 0.0
    %101 = vmatprep.subr.mxu0 0.0
    %102 = vmatpush1.msra.mxu0 0.0
    %103 = vmatprep.subr.mxu0 0.0
    %104 = vmatpush1.msra.mxu0 0.0
    %105 = vmatprep.subr.mxu0 0.0
    %106 = vmatpush1.msra.mxu0 0.0
    %107 = vmatprep.subr.mxu0 0.0
    %108 = vmatpush1.msra.mxu0 0.0
    %109 = vmatprep.subr.mxu0 0.0
    %110 = vmatpush1.msra.mxu0 0.0
    %111 = vmatprep.subr.mxu0 0.0
    %112 = vmatpush1.msra.mxu0 0.0
    %113 = vmatprep.subr.mxu0 0.0
    %114 = vmatpush1.msra.mxu0 0.0
    %115 = vmatprep.subr.mxu0 0.0
    %116 = vmatpush1.msra.mxu0 %v87
    %117 = vmatprep.subr.mxu0 0.0
    %118 = vmatpush1.msra.mxu0 %v70
    %119 = vmatprep.subr.mxu0 0.0
    %120 = vmatpush1.msra.mxu0 %v69
    %121 = vmatprep.subr.mxu0 0.0
    %122 = vmatpush2.msra.mxu0 0.0
    %123 = vmatprep.subr.mxu0 0.0
    %124 = vmatpush2.msra.mxu0 0.0
    %125 = vmatprep.subr.mxu0 0.0
    %126 = vmatpush2.msra.mxu0 0.0
    %127 = vmatprep.subr.mxu0 0.0
    %128 = vmatpush2.msra.mxu0 0.0
    %129 = vmatprep.subr.mxu0 0.0
    %130 = vmatpush2.msra.mxu0 0.0
    %131 = vmatprep.subr.mxu0 0.0
    %132 = vmatpush2.msra.mxu0 0.0
    %133 = vmatprep.subr.mxu0 0.0
    %134 = vmatpush2.msra.mxu0 0.0
    %135 = vmatprep.subr.mxu0 0.0
    %136 = vmatpush2.msra.mxu0 0.0
    %137 = vmatprep.subr.mxu0 0.0
    %138 = vmatpush2.msra.mxu0 0.0
    %139 = vmatprep.subr.mxu0 0.0
    %140 = vmatpush2.msra.mxu0 0.0
    %141 = vmatprep.subr.mxu0 0.0
    %142 = vmatpush2.msra.mxu0 0.0
    %143 = vmatprep.subr.mxu0 0.0
    %144 = vmatpush2.msra.mxu0 0.0
    %145 = vmatprep.subr.mxu0 0.0
    %146 = vmatpush2.msra.mxu0 0.0
    %147 = vmatprep.subr.mxu0 0.0
    %148 = vmatpush2.msra.mxu0 0.0
    %149 = vmatprep.subr.mxu0 0.0
    %150 = vmatpush2.msra.mxu0 0.0
    %151 = vmatprep.subr.mxu0 0.0
    %152 = vmatpush2.msra.mxu0 0.0
    %153 = vmatprep.mubr.f32.mxu0 0.0
    %154 = vmatmul.mubr.f32.gmra.mxu0 %v74
    %v155 = vpop.f32.mrf.mxu0
    %v156 = vadd.f32 0.0, %v155
    %v157 = vpop.f32.mrf.mxu0
    %158 = vmatprep.mubr.f32.mxu0 0.0
    %159 = vmatmul.mubr.f32.gmra.mxu0 %v77
    %v160 = vpop.f32.mrf.mxu0
    %v161 = vadd.f32 0.0, %v160
    %v162 = vpop.f32.mrf.mxu0
    %163 = vmatprep.mubr.f32.mxu0 0.0
    %164 = vmatmul.mubr.f32.gmra.mxu0 %v80
    %v165 = vpop.f32.mrf.mxu0
    %v166 = vadd.f32 0.0, %v165
    %v167 = vpop.f32.mrf.mxu0
    %168 = vmatprep.mubr.f32.mxu0 0.0
    %169 = vmatmul.mubr.f32.gmra.mxu0 %v83
    %v170 = vpop.f32.mrf.mxu0
    %v171 = vadd.f32 0.0, %v170
    %v172 = vpop.f32.mrf.mxu0
    %173 = vdwg.mxu0
    %v174 = vld [vmem:[%s2] sm:$0x1]
    %v176 = vlaneseq
    %v177 = vshrl.u32 %v176, 7
    %v178 = vsub.s32 0, %v177
    %v179 = vrot.slane %v174, %v178
    %v181 = vadd.f32 %v156, %v179
    %v182 = vadd.f32 %v161, %v179
    %v183 = vadd.f32 %v166, %v179
    %v184 = vadd.f32 %v171, %v179
    %v185 = vadd.f32 %v181, %v182
    %v186 = vrot.slane %v185, 4
    %v187 = vadd.f32 %v185, %v186
    %v188 = vrot.slane %v187, 2
    %v189 = vadd.f32 %v187, %v188
    %v190 = vrot.slane %v189, 1
    %v191 = vadd.f32 %v189, %v190
    %v192 = vadd.f32 %v183, %v184
    %v193 = vrot.slane %v192, 4
    %v194 = vadd.f32 %v192, %v193
    %v195 = vrot.slane %v194, 2
    %v196 = vadd.f32 %v194, %v195
    %v197 = vrot.slane %v196, 1
    %v198 = vadd.f32 %v196, %v197
    %v199 = vld [vmem:[#allocation7] sm:$0xff]
    %v200 = vld [vmem:[#allocation7 + $0x8] sm:$0xff]
    %v201 = vld [vmem:[#allocation7 + $0x10] sm:$0xff]
    %v202 = vld [vmem:[#allocation7 + $0x18] sm:$0xff]
    %v203 = vld [vmem:[#allocation7 + $0x20] sm:$0xff]
    %v204 = vld [vmem:[#allocation7 + $0x28] sm:$0xff]
    %v205 = vld [vmem:[#allocation7 + $0x30] sm:$0xff]
    %v206 = vld [vmem:[#allocation7 + $0x38] sm:$0xff]
    %v207 = vld [vmem:[#allocation7 + $0x40] sm:$0xff]
    %v208 = vld [vmem:[#allocation7 + $0x48] sm:$0xff]
    %v209 = vld [vmem:[#allocation7 + $0x50] sm:$0xff]
    %v210 = vld [vmem:[#allocation7 + $0x58] sm:$0xff]
    %v211 = vld [vmem:[#allocation7 + $0x60] sm:$0xff]
    %v212 = vld [vmem:[#allocation7 + $0x68] sm:$0xff]
    %v213 = vld [vmem:[#allocation7 + $0x70] sm:$0xff]
    %v214 = vld [vmem:[#allocation7 + $0x78] sm:$0xff]
    %vm217 = vcmask 1041409
    %v218 = vsel %vm217, %v198, %v191
    %220 = vmatprep.subr.mxu0 0.0
    %221 = vmatpush1.msra.mxu0 %v214
    %222 = vmatprep.subr.mxu0 0.0
    %223 = vmatpush1.msra.mxu0 %v213
    %224 = vmatprep.subr.mxu0 0.0
    %225 = vmatpush1.msra.mxu0 %v212
    %226 = vmatprep.subr.mxu0 0.0
    %227 = vmatpush1.msra.mxu0 %v211
    %228 = vmatprep.subr.mxu0 0.0
    %229 = vmatpush1.msra.mxu0 %v210
    %230 = vmatprep.subr.mxu0 0.0
    %231 = vmatpush1.msra.mxu0 %v209
    %232 = vmatprep.subr.mxu0 0.0
    %233 = vmatpush1.msra.mxu0 %v208
    %234 = vmatprep.subr.mxu0 0.0
    %235 = vmatpush1.msra.mxu0 %v207
    %236 = vmatprep.subr.mxu0 0.0
    %237 = vmatpush1.msra.mxu0 %v206
    %238 = vmatprep.subr.mxu0 0.0
    %239 = vmatpush1.msra.mxu0 %v205
    %240 = vmatprep.subr.mxu0 0.0
    %241 = vmatpush1.msra.mxu0 %v204
    %242 = vmatprep.subr.mxu0 0.0
    %243 = vmatpush1.msra.mxu0 %v203
    %244 = vmatprep.subr.mxu0 0.0
    %245 = vmatpush1.msra.mxu0 %v202
    %246 = vmatprep.subr.mxu0 0.0
    %247 = vmatpush1.msra.mxu0 %v201
    %248 = vmatprep.subr.mxu0 0.0
    %249 = vmatpush1.msra.mxu0 %v200
    %250 = vmatprep.subr.mxu0 0.0
    %251 = vmatpush1.msra.mxu0 %v199
    %252 = vmatprep.subr.mxu0 0.0
    %253 = vmatpush2.msra.mxu0 0.0
    %254 = vmatprep.subr.mxu0 0.0
    %255 = vmatpush2.msra.mxu0 0.0
    %256 = vmatprep.subr.mxu0 0.0
    %257 = vmatpush2.msra.mxu0 0.0
    %258 = vmatprep.subr.mxu0 0.0
    %259 = vmatpush2.msra.mxu0 0.0
    %260 = vmatprep.subr.mxu0 0.0
    %261 = vmatpush2.msra.mxu0 0.0
    %262 = vmatprep.subr.mxu0 0.0
    %263 = vmatpush2.msra.mxu0 0.0
    %264 = vmatprep.subr.mxu0 0.0
    %265 = vmatpush2.msra.mxu0 0.0
    %266 = vmatprep.subr.mxu0 0.0
    %267 = vmatpush2.msra.mxu0 0.0
    %268 = vmatprep.subr.mxu0 0.0
    %269 = vmatpush2.msra.mxu0 0.0
    %270 = vmatprep.subr.mxu0 0.0
    %271 = vmatpush2.msra.mxu0 0.0
    %272 = vmatprep.subr.mxu0 0.0
    %273 = vmatpush2.msra.mxu0 0.0
    %274 = vmatprep.subr.mxu0 0.0
    %275 = vmatpush2.msra.mxu0 0.0
    %276 = vmatprep.subr.mxu0 0.0
    %277 = vmatpush2.msra.mxu0 0.0
    %278 = vmatprep.subr.mxu0 0.0
    %279 = vmatpush2.msra.mxu0 0.0
    %280 = vmatprep.subr.mxu0 0.0
    %281 = vmatpush2.msra.mxu0 0.0
    %282 = vmatprep.subr.mxu0 0.0
    %283 = vmatpush2.msra.mxu0 0.0
    %284 = vmatprep.mubr.f32.mxu0 0.0
    %285 = vmatmul.mubr.f32.gmra.mxu0 %v218
    %v286 = vpop.f32.mrf.mxu0
    %v287 = vadd.f32 0.0, %v286
    %v288 = vpop.f32.mrf.mxu0
    %289 = vdwg.mxu0
    %v292 = vunpack.c.l.s4 1966171168
    %v293 = vunpack.c.0.s8 %v292
    %v294 = vlaneseq
    %v295 = vshrl.u32 %v294, 7
    %v296 = vsub.s32 %v293, %v295
    %v297 = vrot.slane %v287, %v296
    %v298 = vcombine.high %v297, %v297
    %v300 = vunpack.c.l.s4 1966171168
    %v301 = vunpack.c.0.s8 %v300
    %v302 = vlaneseq
    %v303 = vshrl.u32 %v302, 7
    %v304 = vsub.s32 %v301, %v303
    %v305 = vrot.slane %v297, %v304
    %v307 = vunpack.c.l.s4 1966171168
    %v308 = vunpack.c.0.s8 %v307
    %v309 = vlaneseq
    %v310 = vshrl.u32 %v309, 7
    %v311 = vsub.s32 %v308, %v310
    %v312 = vrot.slane %v298, %v311
    %v313 = vlaneseq
    %v314 = vshrl.u32 %v313, 7
    %v315 = vsub.s32 0, %v314
    %v316 = vrot.slane %v305, %v315
    %v317 = vlaneseq
    %v318 = vshrl.u32 %v317, 7
    %v319 = vsub.s32 0, %v318
    %v320 = vrot.slane %v312, %v319
    %v323 = vsub.f32 %v181, %v316
    %v324 = vsub.f32 %v182, %v316
    %v325 = vsub.f32 %v183, %v320
    %v326 = vsub.f32 %v184, %v320
    %v327 = vmul.f32 %v323, %v323
    %v328 = vmul.f32 %v324, %v324
    %v329 = vmul.f32 %v325, %v325
    %v330 = vmul.f32 %v326, %v326
    %v331 = vadd.f32 %v327, %v328
    %v332 = vrot.slane %v331, 4
    %v333 = vadd.f32 %v331, %v332
    %v334 = vrot.slane %v333, 2
    %v335 = vadd.f32 %v333, %v334
    %v336 = vrot.slane %v335, 1
    %v337 = vadd.f32 %v335, %v336
    %v338 = vadd.f32 %v329, %v330
    %v339 = vrot.slane %v338, 4
    %v340 = vadd.f32 %v338, %v339
    %v341 = vrot.slane %v340, 2
    %v342 = vadd.f32 %v340, %v341
    %v343 = vrot.slane %v342, 1
    %v344 = vadd.f32 %v342, %v343
    %v347 = vsel %vm217, %v344, %v337
    %349 = vmatprep.subr.mxu0 0.0
    %350 = vmatpush1.msra.mxu0 %v214
    %351 = vmatprep.subr.mxu0 0.0
    %352 = vmatpush1.msra.mxu0 %v213
    %353 = vmatprep.subr.mxu0 0.0
    %354 = vmatpush1.msra.mxu0 %v212
    %355 = vmatprep.subr.mxu0 0.0
    %356 = vmatpush1.msra.mxu0 %v211
    %357 = vmatprep.subr.mxu0 0.0
    %358 = vmatpush1.msra.mxu0 %v210
    %359 = vmatprep.subr.mxu0 0.0
    %360 = vmatpush1.msra.mxu0 %v209
    %361 = vmatprep.subr.mxu0 0.0
    %362 = vmatpush1.msra.mxu0 %v208
    %363 = vmatprep.subr.mxu0 0.0
    %364 = vmatpush1.msra.mxu0 %v207
    %365 = vmatprep.subr.mxu0 0.0
    %366 = vmatpush1.msra.mxu0 %v206
    %367 = vmatprep.subr.mxu0 0.0
    %368 = vmatpush1.msra.mxu0 %v205
    %369 = vmatprep.subr.mxu0 0.0
    %370 = vmatpush1.msra.mxu0 %v204
    %371 = vmatprep.subr.mxu0 0.0
    %372 = vmatpush1.msra.mxu0 %v203
    %373 = vmatprep.subr.mxu0 0.0
    %374 = vmatpush1.msra.mxu0 %v202
    %375 = vmatprep.subr.mxu0 0.0
    %376 = vmatpush1.msra.mxu0 %v201
    %377 = vmatprep.subr.mxu0 0.0
    %378 = vmatpush1.msra.mxu0 %v200
    %379 = vmatprep.subr.mxu0 0.0
    %380 = vmatpush1.msra.mxu0 %v199
    %381 = vmatprep.subr.mxu0 0.0
    %382 = vmatpush2.msra.mxu0 0.0
    %383 = vmatprep.subr.mxu0 0.0
    %384 = vmatpush2.msra.mxu0 0.0
    %385 = vmatprep.subr.mxu0 0.0
    %386 = vmatpush2.msra.mxu0 0.0
    %387 = vmatprep.subr.mxu0 0.0
    %388 = vmatpush2.msra.mxu0 0.0
    %389 = vmatprep.subr.mxu0 0.0
    %390 = vmatpush2.msra.mxu0 0.0
    %391 = vmatprep.subr.mxu0 0.0
    %392 = vmatpush2.msra.mxu0 0.0
    %393 = vmatprep.subr.mxu0 0.0
    %394 = vmatpush2.msra.mxu0 0.0
    %395 = vmatprep.subr.mxu0 0.0
    %396 = vmatpush2.msra.mxu0 0.0
    %397 = vmatprep.subr.mxu0 0.0
    %398 = vmatpush2.msra.mxu0 0.0
    %399 = vmatprep.subr.mxu0 0.0
    %400 = vmatpush2.msra.mxu0 0.0
    %401 = vmatprep.subr.mxu0 0.0
    %402 = vmatpush2.msra.mxu0 0.0
    %403 = vmatprep.subr.mxu0 0.0
    %404 = vmatpush2.msra.mxu0 0.0
    %405 = vmatprep.subr.mxu0 0.0
    %406 = vmatpush2.msra.mxu0 0.0
    %407 = vmatprep.subr.mxu0 0.0
    %408 = vmatpush2.msra.mxu0 0.0
    %409 = vmatprep.subr.mxu0 0.0
    %410 = vmatpush2.msra.mxu0 0.0
    %411 = vmatprep.subr.mxu0 0.0
    %412 = vmatpush2.msra.mxu0 0.0
    %413 = vmatprep.mubr.f32.mxu0 0.0
    %414 = vmatmul.mubr.f32.gmra.mxu0 %v347
    %v415 = vpop.f32.mrf.mxu0
    %v416 = vadd.f32 1e-05, %v415
    %v417 = vpop.f32.mrf.mxu0
    %418 = vdwg.mxu0
    %v419 = vrsqrt.pop %v416
    %v420 = vld [vmem:[%s4] sm:$0x1]
    %v422 = vlaneseq
    %v423 = vshrl.u32 %v422, 7
    %v424 = vsub.s32 0, %v423
    %v425 = vrot.slane %v420, %v424
    %v427 = vmul.f32 %v419, %v425
    %v430 = vunpack.c.l.s4 1966171168
    %v431 = vunpack.c.0.s8 %v430
    %v432 = vlaneseq
    %v433 = vshrl.u32 %v432, 7
    %v434 = vsub.s32 %v431, %v433
    %v435 = vrot.slane %v427, %v434
    %v436 = vcombine.high %v435, %v435
    %v438 = vunpack.c.l.s4 1966171168
    %v439 = vunpack.c.0.s8 %v438
    %v440 = vlaneseq
    %v441 = vshrl.u32 %v440, 7
    %v442 = vsub.s32 %v439, %v441
    %v443 = vrot.slane %v435, %v442
    %v445 = vunpack.c.l.s4 1966171168
    %v446 = vunpack.c.0.s8 %v445
    %v447 = vlaneseq
    %v448 = vshrl.u32 %v447, 7
    %v449 = vsub.s32 %v446, %v448
    %v450 = vrot.slane %v436, %v449
    %v451 = vlaneseq
    %v452 = vshrl.u32 %v451, 7
    %v453 = vsub.s32 0, %v452
    %v454 = vrot.slane %v443, %v453
    %v455 = vlaneseq
    %v456 = vshrl.u32 %v455, 7
    %v457 = vsub.s32 0, %v456
    %v458 = vrot.slane %v450, %v457
    %v461 = vmul.f32 %v323, %v454
    %v462 = vmul.f32 %v324, %v454
    %v463 = vmul.f32 %v325, %v458
    %v464 = vmul.f32 %v326, %v458
    %v465 = vld [vmem:[%s5] sm:$0x1]
    %v467 = vlaneseq
    %v468 = vshrl.u32 %v467, 7
    %v469 = vsub.s32 0, %v468
    %v470 = vrot.slane %v465, %v469
    %v472 = vadd.f32 %v461, %v470
    %v473 = vadd.f32 %v462, %v470
    %v474 = vadd.f32 %v463, %v470
    %v475 = vadd.f32 %v464, %v470
    %v476 = vand.u32 2147483647, %v472
    %v477 = vand.u32 2147483647, %v473
    %v478 = vand.u32 2147483647, %v474
    %v479 = vand.u32 2147483647, %v475
    %v480 = vsub.f32 0.0, %v476
    %v481 = vsub.f32 0.0, %v477
    %v482 = vsub.f32 0.0, %v478
    %v483 = vsub.f32 0.0, %v479
    %v484 = vmul.f32 %v480, 1.442695
    %v485 = vpow.pop %v484
    %v486 = vmul.f32 %v481, 1.442695
    %v487 = vpow.pop %v486
    %v488 = vmul.f32 %v482, 1.442695
    %v489 = vpow.pop %v488
    %v490 = vmul.f32 %v483, 1.442695
    %v491 = vpow.pop %v490
    %v492 = vadd.f32 %v485, 1.0
    %v493 = vadd.f32 %v487, 1.0
    %v494 = vadd.f32 %v489, 1.0
    %v495 = vadd.f32 %v491, 1.0
    %v496 = vmul.f32 %v492, %v492
    %v497 = vmul.f32 %v493, %v493
    %v498 = vmul.f32 %v494, %v494
    %v499 = vmul.f32 %v495, %v495
    %vm500 = vcmp.ge.f32.partialorder %v472, 0.0
    %vm501 = vcmp.ge.f32.partialorder %v473, 0.0
    %vm502 = vcmp.ge.f32.partialorder %v474, 0.0
    %vm503 = vcmp.ge.f32.partialorder %v475, 0.0
    %v504 = vmul.f32 %v485, %v485
    %v505 = vmul.f32 %v487, %v487
    %v506 = vmul.f32 %v489, %v489
    %v507 = vmul.f32 %v491, %v491
    %v508 = vsel %vm500, %v504, 1.0
    %v509 = vsel %vm501, %v505, 1.0
    %v510 = vsel %vm502, %v506, 1.0
    %v511 = vsel %vm503, %v507, 1.0
    %v512 = vsub.f32 %v496, %v508
    %v513 = vsub.f32 %v497, %v509
    %v514 = vsub.f32 %v498, %v510
    %v515 = vsub.f32 %v499, %v511
    %v516 = vadd.f32 %v496, %v508
    %v517 = vadd.f32 %v497, %v509
    %v518 = vadd.f32 %v498, %v510
    %v519 = vadd.f32 %v499, %v511
    %v520 = vrcp.pop %v516
    %v521 = vrcp.pop %v517
    %v522 = vrcp.pop %v518
    %v523 = vrcp.pop %v519
    %v524 = vmul.f32 %v516, %v520
    %v525 = vmul.f32 %v517, %v521
    %v526 = vmul.f32 %v518, %v522
    %v527 = vmul.f32 %v519, %v523
    %v528 = vsub.f32 2.0, %v524
    %v529 = vsub.f32 2.0, %v525
    %v530 = vsub.f32 2.0, %v526
    %v531 = vsub.f32 2.0, %v527
    %v532 = vmul.f32 %v520, %v528
    %v533 = vmul.f32 %v521, %v529
    %v534 = vmul.f32 %v522, %v530
    %v535 = vmul.f32 %v523, %v531
    %v536 = vmul.f32 %v472, %v512
    %v537 = vmul.f32 %v473, %v513
    %v538 = vmul.f32 %v474, %v514
    %v539 = vmul.f32 %v475, %v515
    %v540 = vmul.f32 %v536, %v532
    %v541 = vmul.f32 %v537, %v533
    %v542 = vmul.f32 %v538, %v534
    %v543 = vmul.f32 %v539, %v535
    %544 = vst [vmem:[#allocation8] sm:$0xff] %v540
    %545 = vst [vmem:[#allocation8 + $0x8] sm:$0xff] %v541
    %546 = vst [vmem:[#allocation8 + $0x10] sm:$0xff] %v542
    %547 = vst [vmem:[#allocation8 + $0x18] sm:$0xff] %v543
    // Predicated region
    $region38: #{tpu_custom_call.1} parent=1 // pred_check
      _
    $region39: #{tpu_custom_call.1} parent=1 // pred_check_branch
      %549 = sbr.rel (0) target = $region41
    $region40: #{tpu_custom_call.1} parent=1 // pred_region
      %s551 = ssub.s32 512, 512
      %552 = vsyncadd [#allocation4], %s551
      %s553 = sshll.u32 [#allocation8], 4
      %s554 = int_to_ptr.vmem [resolvable:$true] %s553
      %559 = dma.vmem_to_hbm [thread:$0]  %s554, 512, %s6, [#allocation4], 128, 128, 8
    $region41: #{tpu_custom_call.1} parent=1 // pred_fallthru
      _
    // Predicated region
    $region42: #{tpu_custom_call.1} parent=1 // pred_check
      _
    $region43: #{tpu_custom_call.1} parent=1 // pred_check_branch
      %561 = sbr.rel (0) target = $region45
    $region44: #{tpu_custom_call.1} parent=1 // pred_region
      %562 = dma.done [#allocation4], 512
    $region45: #{tpu_custom_call.1} parent=1 // pred_fallthru
      _
    %563 = vsyncpa [#allocation3], 1
    %564 = vsyncpa [#allocation6], 1
    %565 = vsyncpa [#allocation4], 1

</llo_original>
